<compile_context>
chip_gen: v7x
topology: tpu7x:2x2x1
jax: 0.10.0
libtpu: 0.0.40
codegen_flags: <defaults>
</compile_context>

<pallas_src>
import math

import jax
import jax.numpy as jnp
import numpy as np
from jax.experimental import pallas as pl
from jax.experimental.pallas import tpu as pltpu


def ram_decoder_kernel(enc_ref, h0_ref, mask_ref,
                       w_ih_ref, w_hh_ref, b_gru_ref,
                       w_ctx_ref, w_dec_ref, b_dense_ref,
                       out_ref):
    H = w_hh_ref.shape[0]
    enc = enc_ref[0]                                    # (S, D) f32

    # 1) decoder input = max over the sequence (sublane reduce, XLU)
    x = jnp.max(enc, axis=0, keepdims=True)             # (1, D)

    # 2) initial hidden = sum of the two directions of last_hidden
    h_pair = h0_ref[0]                                  # (2, H)
    h = h_pair[0:1, :] + h_pair[1:2, :]                 # (1, H)

    # 3) single-step GRU cell, fused: gates packed [r|z|n] along lanes.
    gi = jnp.dot(x, w_ih_ref[...],
                 preferred_element_type=jnp.float32) + b_gru_ref[0:1, :]   # (1, 3H)
    gh = jnp.dot(h, w_hh_ref[...],
                 preferred_element_type=jnp.float32) + b_gru_ref[1:2, :]   # (1, 3H)
    r = jax.nn.sigmoid(gi[:, 0:H] + gh[:, 0:H])
    z = jax.nn.sigmoid(gi[:, H:2 * H] + gh[:, H:2 * H])
    n = jnp.tanh(gi[:, 2 * H:3 * H] + r * gh[:, 2 * H:3 * H])
    dec = (1.0 - z) * n + z * h                         # (1, H)

    # 4) attention: scaled dot-product with additive mask + softmax, kept on
    #    the VPU/XLU (q=1, so an MXU matmul would be pure push/drain latency).
    # TODO(synk): the original `Attention` module source is not provided; this
    # implements standard scaled dot-product attention (mask==0 -> -inf).
    s = jnp.sum(dec * enc, axis=-1, keepdims=True)      # (S, 1) cross-lane reduce
    s = s * (1.0 / math.sqrt(H)) + mask_ref[0]          # additive mask (0 / -1e30)
    s = s - jnp.max(s, axis=0, keepdims=True)
    e = jnp.exp(s)                                      # unnormalized scores
    inv_denom = pl.reciprocal(jnp.sum(e, axis=0, keepdims=True), approx=True)

    # attention_dropout has p=0 -> identity (inference semantics)

    # 5) context = weighted sum over the sequence (sublane reduce), normalized
    #    once on the (1, D) result instead of on the (S, 1) score column.
    ctx = jnp.sum(e * enc, axis=0, keepdims=True) * inv_denom   # (1, D)

    # 6) dense head: split weights instead of lane-axis concat; output is
    #    lane-dense (padded to 128 lanes).
    out = (jnp.dot(ctx, w_ctx_ref[...], preferred_element_type=jnp.float32)
           + jnp.dot(dec, w_dec_ref[...], preferred_element_type=jnp.float32)
           + b_dense_ref[...])                          # (1, P_pad)
    out_ref[0] = out


def ram_decoder(encoder_out, last_hidden, mask, params):
    B, S, D = encoder_out.shape
    H = params['w_hh'].shape[-1]
    P = params['w_dense'].shape[-1]
    P_pad = pl.cdiv(P, 128) * 128                       # lane-dense output width

    f32 = jnp.float32

    # --- fuse GRU weights/biases (gate order r, z, n) ---
    w_ih = jnp.concatenate([params['w_ih'][g] for g in range(3)], axis=-1)  # (D, 3H)
    w_hh = jnp.concatenate([params['w_hh'][g] for g in range(3)], axis=-1)  # (H, 3H)
    b_gru = jnp.stack([params['b_ih'].reshape(3 * H),
                       params['b_hh'].reshape(3 * H)], axis=0).astype(f32)  # (2, 3H)

    # --- split + lane-pad the dense head ---
    w_ctx = jnp.pad(params['w_dense'][:H], ((0, 0), (0, P_pad - P)))        # (H, P_pad)
    w_dec = jnp.pad(params['w_dense'][H:], ((0, 0), (0, P_pad - P)))        # (H, P_pad)
    b_pad = jnp.pad(params['b_dense'], ((0, 0), (0, P_pad - P)))            # (1, P_pad)

    # --- activation preprocessing (layout only) ---
    h0t = jnp.transpose(last_hidden, (1, 0, 2))                             # (B, 2, H)
    mask_add = jnp.where(mask > 0, 0.0, -1e30).astype(f32)                  # (B, 1, S)
    mask_add = jnp.swapaxes(mask_add, 1, 2)                                 # (B, S, 1)

    out = pl.pallas_call(
        ram_decoder_kernel,
        out_shape=jax.ShapeDtypeStruct((B, 1, P_pad), f32),
        grid=(B,),
        in_specs=[
            pl.BlockSpec((1, S, D), lambda b: (b, 0, 0)),      # encoder_out
            pl.BlockSpec((1, 2, H), lambda b: (b, 0, 0)),      # last_hidden (B-major)
            pl.BlockSpec((1, S, 1), lambda b: (b, 0, 0)),      # additive mask
            pl.BlockSpec((D, 3 * H), lambda b: (0, 0)),        # fused W_ih
            pl.BlockSpec((H, 3 * H), lambda b: (0, 0)),        # fused W_hh
            pl.BlockSpec((2, 3 * H), lambda b: (0, 0)),        # fused biases
            pl.BlockSpec((H, P_pad), lambda b: (0, 0)),        # dense W (ctx half)
            pl.BlockSpec((H, P_pad), lambda b: (0, 0)),        # dense W (dec half)
            pl.BlockSpec((1, P_pad), lambda b: (0, 0)),        # dense bias
        ],
        out_specs=pl.BlockSpec((1, 1, P_pad), lambda b: (b, 0, 0)),
        compiler_params=pltpu.CompilerParams(
            dimension_semantics=("parallel",)),
    )(encoder_out, h0t, mask_add, w_ih, w_hh, b_gru, w_ctx, w_dec, b_pad)

    return out[:, 0, :P]


def ram_decoder_reference(encoder_out, last_hidden, mask, params):
    """Pure-JAX reference implementing identical math."""
    H = params['w_hh'].shape[-1]
    x = jnp.max(encoder_out, axis=1)
    h = last_hidden[0] + last_hidden[1]
    gi_r = x @ params['w_ih'][0] + params['b_ih'][0]
    gi_z = x @ params['w_ih'][1] + params['b_ih'][1]
    gi_n = x @ params['w_ih'][2] + params['b_ih'][2]
    gh_r = h @ params['w_hh'][0] + params['b_hh'][0]
    gh_z = h @ params['w_hh'][1] + params['b_hh'][1]
    gh_n = h @ params['w_hh'][2] + params['b_hh'][2]
    r = jax.nn.sigmoid(gi_r + gh_r)
    z = jax.nn.sigmoid(gi_z + gh_z)
    n = jnp.tanh(gi_n + r * gh_n)
    dec = (1.0 - z) * n + z * h
    s = jnp.einsum('bd,bkd->bk', dec, encoder_out) / math.sqrt(H)
    s = jnp.where(mask[:, 0, :] > 0, s, -1e30)
    score = jax.nn.softmax(s, axis=-1)
    ctx = jnp.einsum('bk,bkd->bd', score, encoder_out)
    ch = jnp.concatenate([ctx, dec], axis=-1)
    return ch @ params['w_dense'] + params['b_dense']


if __name__ == "__main__":
    B, S = 2, 8            # batch, sequence length
    H = 32                 # hidden_size == word_dim (GRU input dim)
    P = 3                  # num_polar
    D = H

    key = jax.random.PRNGKey(0)
    ks = jax.random.split(key, 10)

    encoder_out = jax.random.normal(ks[0], (B, S, D), jnp.float32)
    last_hidden = jax.random.normal(ks[1], (2, B, H), jnp.float32)
    # attention mask: 1 = valid, 0 = masked (last two positions masked out)
    mask = jnp.ones((B, 1, S), jnp.float32).at[:, :, -2:].set(0.0)

    bound = 1.0 / math.sqrt(H)

    def uni(k, shape):
        return jax.random.uniform(k, shape, jnp.float32, -bound, bound)

    # GRU params (PyTorch layout (3H, in), gate order r,z,n) -> (3, in, H)
    w_ih = uni(ks[2], (3 * H, D)).reshape(3, H, D).transpose(0, 2, 1)
    w_hh = uni(ks[3], (3 * H, H)).reshape(3, H, H).transpose(0, 2, 1)
    b_ih = uni(ks[4], (3 * H,)).reshape(3, 1, H)
    b_hh = uni(ks[5], (3 * H,)).reshape(3, 1, H)
    # dense: PyTorch (P, 2H) weight -> (2H, P)
    w_dense = uni(ks[6], (P, 2 * H)).T
    b_dense = uni(ks[7], (P,)).reshape(1, P)

    params = dict(w_ih=w_ih, w_hh=w_hh, b_ih=b_ih, b_hh=b_hh,
                  w_dense=w_dense, b_dense=b_dense)

    out = ram_decoder(encoder_out, last_hidden, mask, params)
    out = jax.block_until_ready(out)

    ref = ram_decoder_reference(encoder_out, last_hidden, mask, params)
    np.testing.assert_allclose(np.asarray(out), np.asarray(ref),
                               rtol=2e-3, atol=2e-3)

    print("KERNEL_OK")
</pallas_src>

<mosaic_0001>
module attributes {stable_mosaic.version = 11 : i64} {
  func.func @ram_decoder_kernel(%arg0: i32, %arg1: memref<1x8x32xf32, #tpu.memory_space<vmem>>, %arg2: memref<1x2x32xf32, #tpu.memory_space<vmem>>, %arg3: memref<1x8x1xf32, #tpu.memory_space<vmem>>, %arg4: memref<32x96xf32, #tpu.memory_space<vmem>>, %arg5: memref<32x96xf32, #tpu.memory_space<vmem>>, %arg6: memref<2x96xf32, #tpu.memory_space<vmem>>, %arg7: memref<32x128xf32, #tpu.memory_space<vmem>>, %arg8: memref<32x128xf32, #tpu.memory_space<vmem>>, %arg9: memref<1x128xf32, #tpu.memory_space<vmem>>, %arg10: memref<1x1x128xf32, #tpu.memory_space<vmem>>) attributes {dimension_semantics = [#tpu.dimension_semantics<parallel>], iteration_bounds = array<i64: 2>, scalar_prefetch = 0 : i64, scratch_operands = 0 : i64, tpu.core_type = #tpu.core_type<tc>, window_params = [{transform_indices = @transform_0, window_bounds = array<i64: 1, 8, 32>}, {transform_indices = @transform_1, window_bounds = array<i64: 1, 2, 32>}, {transform_indices = @transform_2, window_bounds = array<i64: 1, 8, 1>}, {pipeline_mode = #tpu.pipeline_mode<synchronous>, transform_indices = @transform_3, window_bounds = array<i64: 32, 96>}, {pipeline_mode = #tpu.pipeline_mode<synchronous>, transform_indices = @transform_4, window_bounds = array<i64: 32, 96>}, {pipeline_mode = #tpu.pipeline_mode<synchronous>, transform_indices = @transform_5, window_bounds = array<i64: 2, 96>}, {pipeline_mode = #tpu.pipeline_mode<synchronous>, transform_indices = @transform_6, window_bounds = array<i64: 32, 128>}, {pipeline_mode = #tpu.pipeline_mode<synchronous>, transform_indices = @transform_7, window_bounds = array<i64: 32, 128>}, {pipeline_mode = #tpu.pipeline_mode<synchronous>, transform_indices = @transform_8, window_bounds = array<i64: 1, 128>}, {transform_indices = @transform_9, window_bounds = array<i64: 1, 1, 128>}]} {
    %c0 = arith.constant 0 : index
    %c0_0 = arith.constant 0 : index
    %c0_1 = arith.constant 0 : index
    %0 = vector.load %arg1[%c0, %c0_0, %c0_1] : memref<1x8x32xf32, #tpu.memory_space<vmem>>, vector<1x8x32xf32>
    %1 = vector.shape_cast %0 : vector<1x8x32xf32> to vector<8x32xf32>
    %cst = arith.constant dense<0xFF800000> : vector<32xf32>
    %2 = vector.multi_reduction <maximumf>, %1, %cst [0] : vector<8x32xf32> to vector<32xf32>
    %3 = vector.shape_cast %2 : vector<32xf32> to vector<1x32xf32>
    %c0_2 = arith.constant 0 : index
    %c0_3 = arith.constant 0 : index
    %c0_4 = arith.constant 0 : index
    %4 = vector.load %arg2[%c0_2, %c0_3, %c0_4] : memref<1x2x32xf32, #tpu.memory_space<vmem>>, vector<1x2x32xf32>
    %5 = vector.shape_cast %4 : vector<1x2x32xf32> to vector<2x32xf32>
    %6 = vector.extract_strided_slice %5 {offsets = [0, 0], sizes = [1, 32], strides = [1, 1]} : vector<2x32xf32> to vector<1x32xf32>
    %7 = vector.extract_strided_slice %5 {offsets = [1, 0], sizes = [1, 32], strides = [1, 1]} : vector<2x32xf32> to vector<1x32xf32>
    %8 = arith.addf %6, %7 : vector<1x32xf32>
    %c0_5 = arith.constant 0 : index
    %c0_6 = arith.constant 0 : index
    %9 = vector.load %arg4[%c0_5, %c0_6] : memref<32x96xf32, #tpu.memory_space<vmem>>, vector<32x96xf32>
    %cst_7 = arith.constant dense<0.000000e+00> : vector<1x96xf32>
    %10 = tpu.matmul %3, %9, %cst_7 {dimension_numbers = #tpu.dot_dimension_numbers<[1], [0], [0], [1], [0, 0, 1, 1], [], []>} : vector<1x32xf32>, vector<32x96xf32>, vector<1x96xf32> -> vector<1x96xf32>
    %c0_8 = arith.constant 0 : index
    %c0_9 = arith.constant 0 : index
    %11 = vector.load %arg6[%c0_8, %c0_9] : memref<2x96xf32, #tpu.memory_space<vmem>>, vector<1x96xf32>
    %12 = arith.addf %10, %11 : vector<1x96xf32>
    %c0_10 = arith.constant 0 : index
    %c0_11 = arith.constant 0 : index
    %13 = vector.load %arg5[%c0_10, %c0_11] : memref<32x96xf32, #tpu.memory_space<vmem>>, vector<32x96xf32>
    %cst_12 = arith.constant dense<0.000000e+00> : vector<1x96xf32>
    %14 = tpu.matmul %8, %13, %cst_12 {dimension_numbers = #tpu.dot_dimension_numbers<[1], [0], [0], [1], [0, 0, 1, 1], [], []>} : vector<1x32xf32>, vector<32x96xf32>, vector<1x96xf32> -> vector<1x96xf32>
    %c1 = arith.constant 1 : index
    %c0_13 = arith.constant 0 : index
    %15 = vector.load %arg6[%c1, %c0_13] : memref<2x96xf32, #tpu.memory_space<vmem>>, vector<1x96xf32>
    %16 = arith.addf %14, %15 : vector<1x96xf32>
    %17 = vector.extract_strided_slice %12 {offsets = [0, 0], sizes = [1, 32], strides = [1, 1]} : vector<1x96xf32> to vector<1x32xf32>
    %18 = vector.extract_strided_slice %16 {offsets = [0, 0], sizes = [1, 32], strides = [1, 1]} : vector<1x96xf32> to vector<1x32xf32>
    %19 = arith.addf %17, %18 : vector<1x32xf32>
    %20 = arith.negf %19 : vector<1x32xf32>
    %21 = math.exp %20 : vector<1x32xf32>
    %cst_14 = arith.constant 1.000000e+00 : f32
    %22 = vector.broadcast %cst_14 : f32 to vector<1x32xf32>
    %23 = arith.addf %22, %21 : vector<1x32xf32>
    %24 = arith.divf %22, %23 : vector<1x32xf32>
    %25 = vector.extract_strided_slice %12 {offsets = [0, 32], sizes = [1, 32], strides = [1, 1]} : vector<1x96xf32> to vector<1x32xf32>
    %26 = vector.extract_strided_slice %16 {offsets = [0, 32], sizes = [1, 32], strides = [1, 1]} : vector<1x96xf32> to vector<1x32xf32>
    %27 = arith.addf %25, %26 : vector<1x32xf32>
    %28 = arith.negf %27 : vector<1x32xf32>
    %29 = math.exp %28 : vector<1x32xf32>
    %cst_15 = arith.constant 1.000000e+00 : f32
    %30 = vector.broadcast %cst_15 : f32 to vector<1x32xf32>
    %31 = arith.addf %30, %29 : vector<1x32xf32>
    %32 = arith.divf %30, %31 : vector<1x32xf32>
    %33 = vector.extract_strided_slice %12 {offsets = [0, 64], sizes = [1, 32], strides = [1, 1]} : vector<1x96xf32> to vector<1x32xf32>
    %34 = vector.extract_strided_slice %16 {offsets = [0, 64], sizes = [1, 32], strides = [1, 1]} : vector<1x96xf32> to vector<1x32xf32>
    %35 = arith.mulf %24, %34 : vector<1x32xf32>
    %36 = arith.addf %33, %35 : vector<1x32xf32>
    %37 = math.tanh %36 : vector<1x32xf32>
    %cst_16 = arith.constant 1.000000e+00 : f32
    %38 = vector.broadcast %cst_16 : f32 to vector<1x32xf32>
    %39 = arith.subf %38, %32 : vector<1x32xf32>
    %40 = arith.mulf %39, %37 : vector<1x32xf32>
    %41 = arith.mulf %32, %8 : vector<1x32xf32>
    %42 = arith.addf %40, %41 : vector<1x32xf32>
    %43 = vector.broadcast %42 : vector<1x32xf32> to vector<8x32xf32>
    %44 = arith.mulf %43, %1 : vector<8x32xf32>
    %cst_17 = arith.constant dense<0.000000e+00> : vector<8xf32>
    %45 = vector.multi_reduction <add>, %44, %cst_17 [1] : vector<8x32xf32> to vector<8xf32>
    %46 = vector.shape_cast %45 : vector<8xf32> to vector<8x1xf32>
    %cst_18 = arith.constant 0.176776692 : f32
    %47 = vector.broadcast %cst_18 : f32 to vector<8x1xf32>
    %48 = arith.mulf %46, %47 : vector<8x1xf32>
    %c0_19 = arith.constant 0 : index
    %c0_20 = arith.constant 0 : index
    %c0_21 = arith.constant 0 : index
    %49 = vector.load %arg3[%c0_19, %c0_20, %c0_21] : memref<1x8x1xf32, #tpu.memory_space<vmem>>, vector<1x8x1xf32>
    %50 = vector.shape_cast %49 : vector<1x8x1xf32> to vector<8x1xf32>
    %51 = arith.addf %48, %50 : vector<8x1xf32>
    %cst_22 = arith.constant dense<0xFF800000> : vector<1xf32>
    %52 = vector.multi_reduction <maximumf>, %51, %cst_22 [0] : vector<8x1xf32> to vector<1xf32>
    %53 = vector.shape_cast %52 : vector<1xf32> to vector<1x1xf32>
    %54 = vector.broadcast %53 : vector<1x1xf32> to vector<8x1xf32>
    %55 = arith.subf %51, %54 : vector<8x1xf32>
    %56 = math.exp %55 : vector<8x1xf32>
    %cst_23 = arith.constant dense<0.000000e+00> : vector<1xf32>
    %57 = vector.multi_reduction <add>, %56, %cst_23 [0] : vector<8x1xf32> to vector<1xf32>
    %58 = vector.shape_cast %57 : vector<1xf32> to vector<1x1xf32>
    %59 = tpu.reciprocal %58 {approx = true} : vector<1x1xf32> -> vector<1x1xf32>
    %60 = vector.broadcast %56 : vector<8x1xf32> to vector<8x32xf32>
    %61 = arith.mulf %60, %1 : vector<8x32xf32>
    %cst_24 = arith.constant dense<0.000000e+00> : vector<32xf32>
    %62 = vector.multi_reduction <add>, %61, %cst_24 [0] : vector<8x32xf32> to vector<32xf32>
    %63 = vector.shape_cast %62 : vector<32xf32> to vector<1x32xf32>
    %64 = vector.broadcast %59 : vector<1x1xf32> to vector<1x32xf32>
    %65 = arith.mulf %63, %64 : vector<1x32xf32>
    %c0_25 = arith.constant 0 : index
    %c0_26 = arith.constant 0 : index
    %66 = vector.load %arg7[%c0_25, %c0_26] : memref<32x128xf32, #tpu.memory_space<vmem>>, vector<32x128xf32>
    %cst_27 = arith.constant dense<0.000000e+00> : vector<1x128xf32>
    %67 = tpu.matmul %65, %66, %cst_27 {dimension_numbers = #tpu.dot_dimension_numbers<[1], [0], [0], [1], [0, 0, 1, 1], [], []>} : vector<1x32xf32>, vector<32x128xf32>, vector<1x128xf32> -> vector<1x128xf32>
    %c0_28 = arith.constant 0 : index
    %c0_29 = arith.constant 0 : index
    %68 = vector.load %arg8[%c0_28, %c0_29] : memref<32x128xf32, #tpu.memory_space<vmem>>, vector<32x128xf32>
    %cst_30 = arith.constant dense<0.000000e+00> : vector<1x128xf32>
    %69 = tpu.matmul %42, %68, %cst_30 {dimension_numbers = #tpu.dot_dimension_numbers<[1], [0], [0], [1], [0, 0, 1, 1], [], []>} : vector<1x32xf32>, vector<32x128xf32>, vector<1x128xf32> -> vector<1x128xf32>
    %70 = arith.addf %67, %69 : vector<1x128xf32>
    %c0_31 = arith.constant 0 : index
    %c0_32 = arith.constant 0 : index
    %71 = vector.load %arg9[%c0_31, %c0_32] : memref<1x128xf32, #tpu.memory_space<vmem>>, vector<1x128xf32>
    %72 = arith.addf %70, %71 : vector<1x128xf32>
    %c0_33 = arith.constant 0 : index
    %c0_34 = arith.constant 0 : index
    %c0_35 = arith.constant 0 : index
    %73 = vector.load %arg10[%c0_33, %c0_34, %c0_35] : memref<1x1x128xf32, #tpu.memory_space<vmem>>, vector<1x1x128xf32>
    %74 = vector.shape_cast %73 : vector<1x1x128xf32> to vector<1x128xf32>
    %75 = vector.shape_cast %72 : vector<1x128xf32> to vector<1x1x128xf32>
    tpu.vector_store %arg10[%c0_33, %c0_34, %c0_35], %75 {strides = array<i32>} : memref<1x1x128xf32, #tpu.memory_space<vmem>>, vector<1x1x128xf32>,
    return
  }
  func.func @transform_0(%arg0: i32) -> (i32, i32, i32) {
    %c0_i32 = arith.constant 0 : i32
    %c0_i32_0 = arith.constant 0 : i32
    %c0_i32_1 = arith.constant 0 : i32
    return %arg0, %c0_i32, %c0_i32_0 : i32, i32, i32
  }
  func.func @transform_1(%arg0: i32) -> (i32, i32, i32) {
    %c0_i32 = arith.constant 0 : i32
    %c0_i32_0 = arith.constant 0 : i32
    %c0_i32_1 = arith.constant 0 : i32
    return %arg0, %c0_i32, %c0_i32_0 : i32, i32, i32
  }
  func.func @transform_2(%arg0: i32) -> (i32, i32, i32) {
    %c0_i32 = arith.constant 0 : i32
    %c0_i32_0 = arith.constant 0 : i32
    %c0_i32_1 = arith.constant 0 : i32
    return %arg0, %c0_i32, %c0_i32_0 : i32, i32, i32
  }
  func.func @transform_3(%arg0: i32) -> (i32, i32) {
    %c0_i32 = arith.constant 0 : i32
    %c0_i32_0 = arith.constant 0 : i32
    %c0_i32_1 = arith.constant 0 : i32
    return %c0_i32, %c0_i32_0 : i32, i32
  }
  func.func @transform_4(%arg0: i32) -> (i32, i32) {
    %c0_i32 = arith.constant 0 : i32
    %c0_i32_0 = arith.constant 0 : i32
    %c0_i32_1 = arith.constant 0 : i32
    return %c0_i32, %c0_i32_0 : i32, i32
  }
  func.func @transform_5(%arg0: i32) -> (i32, i32) {
    %c0_i32 = arith.constant 0 : i32
    %c0_i32_0 = arith.constant 0 : i32
    %c0_i32_1 = arith.constant 0 : i32
    return %c0_i32, %c0_i32_0 : i32, i32
  }
  func.func @transform_6(%arg0: i32) -> (i32, i32) {
    %c0_i32 = arith.constant 0 : i32
    %c0_i32_0 = arith.constant 0 : i32
    %c0_i32_1 = arith.constant 0 : i32
    return %c0_i32, %c0_i32_0 : i32, i32
  }
  func.func @transform_7(%arg0: i32) -> (i32, i32) {
    %c0_i32 = arith.constant 0 : i32
    %c0_i32_0 = arith.constant 0 : i32
    %c0_i32_1 = arith.constant 0 : i32
    return %c0_i32, %c0_i32_0 : i32, i32
  }
  func.func @transform_8(%arg0: i32) -> (i32, i32) {
    %c0_i32 = arith.constant 0 : i32
    %c0_i32_0 = arith.constant 0 : i32
    %c0_i32_1 = arith.constant 0 : i32
    return %c0_i32, %c0_i32_0 : i32, i32
  }
  func.func @transform_9(%arg0: i32) -> (i32, i32, i32) {
    %c0_i32 = arith.constant 0 : i32
    %c0_i32_0 = arith.constant 0 : i32
    %c0_i32_1 = arith.constant 0 : i32
    return %arg0, %c0_i32, %c0_i32_0 : i32, i32, i32
  }
}

</mosaic_0001>

<llo_original>
// kernel: tpu_custom_call.1
$region0: #{tpu_custom_call.1}
  #allocation0 [shape = 'u32[]', space=smem, size = 0x4, offset = 0x4, fixed_abs, tag = 'smem constant byte address 0x4 - core index']
  #allocation1 [shape = 'u32[144,128]{1,0:T(1,128)}', space=vmem, size = 0x12000, scoped, tag = 'internal scratch']
  %s0 = inlined_call_operand.hbm [shape: f32[2,8,32], index: 0, kind: input, shape index: {}]
  %s1 = inlined_call_operand.hbm [shape: f32[2,2,32], index: 1, kind: input, shape index: {}]
  %s2 = inlined_call_operand.vmem [shape: f32[2,8,1], index: 2, kind: input, shape index: {}]
  %s3 = inlined_call_operand.hbm [shape: f32[32,96], index: 3, kind: input, shape index: {}]
  %s4 = inlined_call_operand.vmem [shape: f32[32,96], index: 4, kind: input, shape index: {}]
  %s5 = inlined_call_operand.vmem [shape: f32[2,96], index: 5, kind: input, shape index: {}]
  %s6 = inlined_call_operand.hbm [shape: f32[32,128], index: 6, kind: input, shape index: {}]
  %s7 = inlined_call_operand.hbm [shape: f32[32,128], index: 7, kind: input, shape index: {}]
  %s8 = inlined_call_operand.vmem [shape: f32[1,128], index: 8, kind: input, shape index: {}]
  %s9 = inlined_call_operand.hbm [shape: f32[2,1,128], index: 9, kind: output, shape index: {}]
  %s10 = sld [smem:[#allocation0]]
  $region89: #{tpu_custom_call.1} parent=0
    _
  %s12 = ssub.s32 1, %s10
  %s13 = scalar_select 0, %s12, %s10
  $region1: #{tpu_custom_call.1} parent=0
    #allocation2 [shape = 'u8[8192]{0}', space=vmem, size = 0x2000, scoped, tag = 'input window, operand 0']
    #allocation3 [shape = 's32[2]{0}', space=sflag, size = 0x8, scoped, tag = 'scoped memory for tpu_custom_call.1']
    #allocation4 [shape = 's32[2]{0}', space=sflag, size = 0x8, scoped, tag = 'scoped memory for tpu_custom_call.1']
    #allocation5 [shape = 'u8[2048]{0}', space=vmem, size = 0x800, scoped, tag = 'input window, operand 1']
    #allocation6 [shape = 's32[2]{0}', space=sflag, size = 0x8, scoped, tag = 'scoped memory for tpu_custom_call.1']
    #allocation7 [shape = 'u8[16384]{0}', space=vmem, size = 0x4000, scoped, tag = 'input window, operand 3, single buffered']
    #allocation8 [shape = 'u8[16384]{0}', space=vmem, size = 0x4000, scoped, tag = 'input window, operand 6, single buffered']
    #allocation9 [shape = 's32[1]{0}', space=sflag, size = 0x4, scoped, tag = 'scoped memory for tpu_custom_call.1']
    #allocation10 [shape = 'u8[16384]{0}', space=vmem, size = 0x4000, scoped, tag = 'input window, operand 7, single buffered']
    #allocation11 [shape = 'u8[1024]{0}', space=vmem, size = 0x400, scoped, tag = 'output window, operand 0']
    %14 = vsyncpa [#allocation3], 0
    %s15 = scalar_lea.sflag [#allocation3], 1
    %16 = vsyncpa %s15, 0
    %17 = vsyncpa [#allocation6], 0
    %s18 = scalar_lea.sflag [#allocation6], 1
    %19 = vsyncpa %s18, 0
    %20 = vsyncpa [#allocation9], 0
    %21 = vsyncpa [#allocation4], 0
    %s22 = scalar_lea.sflag [#allocation4], 1
    %23 = vsyncpa %s22, 0
    loop: start=0, step=1, limit=4
    $region2: #{tpu_custom_call.1} parent=1 // loop_pre_header
      _
    $region3: #{tpu_custom_call.1} parent=1 // loop_header
      %s25 = sphi 0, %s29
      %p26 = scmp.ge.s32.totalorder %s25, 4
      %s35 = sphi 0, %s37
      %s38 = sphi 0, %s35
      %s39 = sphi 0, %s38
      %s55 = sphi 0, %s39
      %s61 = sphi 0, %s63
      %s64 = sphi 0, %s61
      %s65 = sphi 0, %s64
      %s81 = sphi 0, %s65
      %s87 = sphi 0, %s89
      %s90 = sphi 0, %s87
      %s91 = sphi 0, %s90
      %s107 = sphi 0, %s91
      %s111 = sphi 0, %s111
      %s113 = sphi 0, %s111
      %s114 = sphi 0, %s113
      %s128 = sphi 0, %s114
      %s132 = sphi 0, %s132
      %s134 = sphi 0, %s132
      %s135 = sphi 0, %s134
      %s149 = sphi 0, %s135
      %s153 = sphi 0, %s153
      %s155 = sphi 0, %s153
      %s156 = sphi 0, %s155
      %s170 = sphi 0, %s156
      %s174 = sphi 0, %s174
      %s176 = sphi 0, %s174
      %s177 = sphi 0, %s176
      %s191 = sphi 0, %s177
      %s195 = sphi 0, %s195
      %s197 = sphi 0, %s195
      %s198 = sphi 0, %s197
      %s212 = sphi 0, %s198
      %s216 = sphi 0, %s216
      %s218 = sphi 0, %s216
      %s219 = sphi 0, %s218
      %s233 = sphi 0, %s219
      %s239 = sphi 0, %s241
      %s242 = sphi 0, %s239
      %s243 = sphi 0, %s242
      %s259 = sphi 0, %s243
    $region4: #{tpu_custom_call.1} parent=1 // loop_header_branch
      %28 = sbr.rel (%p26) target = $region8
    $region5: #{tpu_custom_call.1} parent=1 // loop_body
      %s30 = ssub.s32 %s25, 1
      %s31 = ssub.s32 %s25, 2
      %s32 = sadd.s32 %s25, 1
      %s33 = ssub.s32 %s25, %s32
      %p34 = scmp.eq.s32.totalorder %s33, 0
      %s36 = sadd.s32 %s35, 1
      %s37 = scalar_select %p34, %s35, %s36
      %p40 = pneg %p34
      %p41 = scmp.eq.s32.totalorder %s25, 1
      %p42 = por %p40, %p41
      %p43 = scmp.ne.s32.totalorder %s35, %s38
      %p44 = scmp.eq.s32.totalorder %s25, 0
      %p45 = por %p43, %p44
      %p46 = scmp.ne.s32.totalorder %s35, %s38
      %p47 = scmp.eq.s32.totalorder %s30, 1
      %p48 = por %p46, %p47
      %p49 = scmp.ne.s32.totalorder %s38, %s39
      %p50 = scmp.eq.s32.totalorder %s30, 0
      %p51 = por %p49, %p50
      %p52 = scmp.ne.s32.totalorder %s38, %s39
      %p53 = scmp.eq.s32.totalorder %s31, 1
      %p54 = por %p52, %p53
      %p56 = scmp.ne.s32.totalorder %s39, %s55
      %p57 = scmp.eq.s32.totalorder %s31, 0
      %p58 = por %p56, %p57
      %s59 = ssub.s32 %s25, %s32
      %p60 = scmp.eq.s32.totalorder %s59, 0
      %s62 = sadd.s32 %s61, 1
      %s63 = scalar_select %p60, %s61, %s62
      %p66 = pneg %p60
      %p67 = scmp.eq.s32.totalorder %s25, 1
      %p68 = por %p66, %p67
      %p69 = scmp.ne.s32.totalorder %s61, %s64
      %p70 = scmp.eq.s32.totalorder %s25, 0
      %p71 = por %p69, %p70
      %p72 = scmp.ne.s32.totalorder %s61, %s64
      %p73 = scmp.eq.s32.totalorder %s30, 1
      %p74 = por %p72, %p73
      %p75 = scmp.ne.s32.totalorder %s64, %s65
      %p76 = scmp.eq.s32.totalorder %s30, 0
      %p77 = por %p75, %p76
      %p78 = scmp.ne.s32.totalorder %s64, %s65
      %p79 = scmp.eq.s32.totalorder %s31, 1
      %p80 = por %p78, %p79
      %p82 = scmp.ne.s32.totalorder %s65, %s81
      %p83 = scmp.eq.s32.totalorder %s31, 0
      %p84 = por %p82, %p83
      %s85 = ssub.s32 %s25, %s32
      %p86 = scmp.eq.s32.totalorder %s85, 0
      %s88 = sadd.s32 %s87, 1
      %s89 = scalar_select %p86, %s87, %s88
      %p92 = pneg %p86
      %p93 = scmp.eq.s32.totalorder %s25, 1
      %p94 = por %p92, %p93
      %p95 = scmp.ne.s32.totalorder %s87, %s90
      %p96 = scmp.eq.s32.totalorder %s25, 0
      %p97 = por %p95, %p96
      %p98 = scmp.ne.s32.totalorder %s87, %s90
      %p99 = scmp.eq.s32.totalorder %s30, 1
      %p100 = por %p98, %p99
      %p101 = scmp.ne.s32.totalorder %s90, %s91
      %p102 = scmp.eq.s32.totalorder %s30, 0
      %p103 = por %p101, %p102
      %p104 = scmp.ne.s32.totalorder %s90, %s91
      %p105 = scmp.eq.s32.totalorder %s31, 1
      %p106 = por %p104, %p105
      %p108 = scmp.ne.s32.totalorder %s91, %s107
      %p109 = scmp.eq.s32.totalorder %s31, 0
      %p110 = por %p108, %p109
      %s112 = sadd.s32 %s111, 1
      %p115 = scmp.eq.s32.totalorder %s25, 1
      %p116 = scmp.ne.s32.totalorder %s111, %s113
      %p117 = scmp.eq.s32.totalorder %s25, 0
      %p118 = por %p116, %p117
      %p119 = scmp.ne.s32.totalorder %s111, %s113
      %p120 = scmp.eq.s32.totalorder %s30, 1
      %p121 = por %p119, %p120
      %p122 = scmp.ne.s32.totalorder %s113, %s114
      %p123 = scmp.eq.s32.totalorder %s30, 0
      %p124 = por %p122, %p123
      %p125 = scmp.ne.s32.totalorder %s113, %s114
      %p126 = scmp.eq.s32.totalorder %s31, 1
      %p127 = por %p125, %p126
      %p129 = scmp.ne.s32.totalorder %s114, %s128
      %p130 = scmp.eq.s32.totalorder %s31, 0
      %p131 = por %p129, %p130
      %s133 = sadd.s32 %s132, 1
      %p136 = scmp.eq.s32.totalorder %s25, 1
      %p137 = scmp.ne.s32.totalorder %s132, %s134
      %p138 = scmp.eq.s32.totalorder %s25, 0
      %p139 = por %p137, %p138
      %p140 = scmp.ne.s32.totalorder %s132, %s134
      %p141 = scmp.eq.s32.totalorder %s30, 1
      %p142 = por %p140, %p141
      %p143 = scmp.ne.s32.totalorder %s134, %s135
      %p144 = scmp.eq.s32.totalorder %s30, 0
      %p145 = por %p143, %p144
      %p146 = scmp.ne.s32.totalorder %s134, %s135
      %p147 = scmp.eq.s32.totalorder %s31, 1
      %p148 = por %p146, %p147
      %p150 = scmp.ne.s32.totalorder %s135, %s149
      %p151 = scmp.eq.s32.totalorder %s31, 0
      %p152 = por %p150, %p151
      %s154 = sadd.s32 %s153, 1
      %p157 = scmp.eq.s32.totalorder %s25, 1
      %p158 = scmp.ne.s32.totalorder %s153, %s155
      %p159 = scmp.eq.s32.totalorder %s25, 0
      %p160 = por %p158, %p159
      %p161 = scmp.ne.s32.totalorder %s153, %s155
      %p162 = scmp.eq.s32.totalorder %s30, 1
      %p163 = por %p161, %p162
      %p164 = scmp.ne.s32.totalorder %s155, %s156
      %p165 = scmp.eq.s32.totalorder %s30, 0
      %p166 = por %p164, %p165
      %p167 = scmp.ne.s32.totalorder %s155, %s156
      %p168 = scmp.eq.s32.totalorder %s31, 1
      %p169 = por %p167, %p168
      %p171 = scmp.ne.s32.totalorder %s156, %s170
      %p172 = scmp.eq.s32.totalorder %s31, 0
      %p173 = por %p171, %p172
      %s175 = sadd.s32 %s174, 1
      %p178 = scmp.eq.s32.totalorder %s25, 1
      %p179 = scmp.ne.s32.totalorder %s174, %s176
      %p180 = scmp.eq.s32.totalorder %s25, 0
      %p181 = por %p179, %p180
      %p182 = scmp.ne.s32.totalorder %s174, %s176
      %p183 = scmp.eq.s32.totalorder %s30, 1
      %p184 = por %p182, %p183
      %p185 = scmp.ne.s32.totalorder %s176, %s177
      %p186 = scmp.eq.s32.totalorder %s30, 0
      %p187 = por %p185, %p186
      %p188 = scmp.ne.s32.totalorder %s176, %s177
      %p189 = scmp.eq.s32.totalorder %s31, 1
      %p190 = por %p188, %p189
      %p192 = scmp.ne.s32.totalorder %s177, %s191
      %p193 = scmp.eq.s32.totalorder %s31, 0
      %p194 = por %p192, %p193
      %s196 = sadd.s32 %s195, 1
      %p199 = scmp.eq.s32.totalorder %s25, 1
      %p200 = scmp.ne.s32.totalorder %s195, %s197
      %p201 = scmp.eq.s32.totalorder %s25, 0
      %p202 = por %p200, %p201
      %p203 = scmp.ne.s32.totalorder %s195, %s197
      %p204 = scmp.eq.s32.totalorder %s30, 1
      %p205 = por %p203, %p204
      %p206 = scmp.ne.s32.totalorder %s197, %s198
      %p207 = scmp.eq.s32.totalorder %s30, 0
      %p208 = por %p206, %p207
      %p209 = scmp.ne.s32.totalorder %s197, %s198
      %p210 = scmp.eq.s32.totalorder %s31, 1
      %p211 = por %p209, %p210
      %p213 = scmp.ne.s32.totalorder %s198, %s212
      %p214 = scmp.eq.s32.totalorder %s31, 0
      %p215 = por %p213, %p214
      %s217 = sadd.s32 %s216, 1
      %p220 = scmp.eq.s32.totalorder %s25, 1
      %p221 = scmp.ne.s32.totalorder %s216, %s218
      %p222 = scmp.eq.s32.totalorder %s25, 0
      %p223 = por %p221, %p222
      %p224 = scmp.ne.s32.totalorder %s216, %s218
      %p225 = scmp.eq.s32.totalorder %s30, 1
      %p226 = por %p224, %p225
      %p227 = scmp.ne.s32.totalorder %s218, %s219
      %p228 = scmp.eq.s32.totalorder %s30, 0
      %p229 = por %p227, %p228
      %p230 = scmp.ne.s32.totalorder %s218, %s219
      %p231 = scmp.eq.s32.totalorder %s31, 1
      %p232 = por %p230, %p231
      %p234 = scmp.ne.s32.totalorder %s219, %s233
      %p235 = scmp.eq.s32.totalorder %s31, 0
      %p236 = por %p234, %p235
      %s237 = ssub.s32 %s25, %s32
      %p238 = scmp.eq.s32.totalorder %s237, 0
      %s240 = sadd.s32 %s239, 1
      %s241 = scalar_select %p238, %s239, %s240
      %p244 = pneg %p238
      %p245 = scmp.eq.s32.totalorder %s25, 1
      %p246 = por %p244, %p245
      %p247 = scmp.ne.s32.totalorder %s239, %s242
      %p248 = scmp.eq.s32.totalorder %s25, 0
      %p249 = por %p247, %p248
      %p250 = scmp.ne.s32.totalorder %s239, %s242
      %p251 = scmp.eq.s32.totalorder %s30, 1
      %p252 = por %p250, %p251
      %p253 = scmp.ne.s32.totalorder %s242, %s243
      %p254 = scmp.eq.s32.totalorder %s30, 0
      %p255 = por %p253, %p254
      %p256 = scmp.ne.s32.totalorder %s242, %s243
      %p257 = scmp.eq.s32.totalorder %s31, 1
      %p258 = por %p256, %p257
      %p260 = scmp.ne.s32.totalorder %s243, %s259
      %p261 = scmp.eq.s32.totalorder %s31, 0
      %p262 = por %p260, %p261
      %p263 = scmp.le.s32.totalorder 1, %s25
      %p264 = scmp.lt.s32.totalorder %s25, 3
      %p265 = pnand %p263, %p264
      %p266 = pneg %p265
      // Predicated region
      $region9: #{tpu_custom_call.1} parent=5 // pred_check
        _
      $region10: #{tpu_custom_call.1} parent=5 // pred_check_branch
        %268 = sbr.rel (%p265) target = $region12
      $region11: #{tpu_custom_call.1} parent=5 // pred_region
        %s269 = ssub.s32 %s25, 1
        // Predicated region
        $region13: #{tpu_custom_call.1} parent=11 // pred_check
          %p270 = pneg %p124
        $region14: #{tpu_custom_call.1} parent=11 // pred_check_branch
          %272 = sbr.rel (%p270) target = $region16
        $region15: #{tpu_custom_call.1} parent=11 // pred_region
          %s274 = ssub.s32 512, 512
          %275 = vsyncadd [#allocation6], %s274
          %s276 = sshll.u32 [#allocation7], 4
          %s277 = int_to_ptr.vmem [resolvable:$true] %s276
          %282 = dma.hbm_to_vmem [thread:$0]  %s3, 512, %s277, [#allocation6], 128, 128, 8
        $region16: #{tpu_custom_call.1} parent=11 // pred_fallthru
          _
        // Predicated region
        $region17: #{tpu_custom_call.1} parent=11 // pred_check
          %p283 = pneg %p145
        $region18: #{tpu_custom_call.1} parent=11 // pred_check_branch
          %285 = sbr.rel (%p283) target = $region20
        $region19: #{tpu_custom_call.1} parent=11 // pred_region
          _
        $region20: #{tpu_custom_call.1} parent=11 // pred_fallthru
          _
        // Predicated region
        $region21: #{tpu_custom_call.1} parent=11 // pred_check
          %p286 = pneg %p166
        $region22: #{tpu_custom_call.1} parent=11 // pred_check_branch
          %288 = sbr.rel (%p286) target = $region24
        $region23: #{tpu_custom_call.1} parent=11 // pred_region
          _
        $region24: #{tpu_custom_call.1} parent=11 // pred_fallthru
          _
        // Predicated region
        $region25: #{tpu_custom_call.1} parent=11 // pred_check
          %p289 = pneg %p187
        $region26: #{tpu_custom_call.1} parent=11 // pred_check_branch
          %291 = sbr.rel (%p289) target = $region28
        $region27: #{tpu_custom_call.1} parent=11 // pred_region
          %s293 = ssub.s32 512, 512
          %294 = vsyncadd [#allocation9], %s293
          %s295 = sshll.u32 [#allocation8], 4
          %s296 = int_to_ptr.vmem [resolvable:$true] %s295
          %301 = dma.hbm_to_vmem [thread:$0]  %s6, 512, %s296, [#allocation9], 128, 128, 8
        $region28: #{tpu_custom_call.1} parent=11 // pred_fallthru
          _
        // Predicated region
        $region29: #{tpu_custom_call.1} parent=11 // pred_check
          %p302 = pneg %p208
        $region30: #{tpu_custom_call.1} parent=11 // pred_check_branch
          %304 = sbr.rel (%p302) target = $region32
        $region31: #{tpu_custom_call.1} parent=11 // pred_region
          %s306 = ssub.s32 512, 512
          %307 = vsyncadd [#allocation9], %s306
          %s308 = sshll.u32 [#allocation10], 4
          %s309 = int_to_ptr.vmem [resolvable:$true] %s308
          %314 = dma.hbm_to_vmem [thread:$0]  %s7, 512, %s309, [#allocation9], 128, 128, 8
        $region32: #{tpu_custom_call.1} parent=11 // pred_fallthru
          _
        // Predicated region
        $region33: #{tpu_custom_call.1} parent=11 // pred_check
          %p315 = pneg %p229
        $region34: #{tpu_custom_call.1} parent=11 // pred_check_branch
          %317 = sbr.rel (%p315) target = $region36
        $region35: #{tpu_custom_call.1} parent=11 // pred_region
          _
        $region36: #{tpu_custom_call.1} parent=11 // pred_fallthru
          _
      $region12: #{tpu_custom_call.1} parent=5 // pred_fallthru
        _
      %p318 = scmp.lt.s32.totalorder %s25, 2
      // Predicated region
      $region37: #{tpu_custom_call.1} parent=5 // pred_check
        %p319 = pneg %p318
      $region38: #{tpu_custom_call.1} parent=5 // pred_check_branch
        %321 = sbr.rel (%p319) target = $region40
      $region39: #{tpu_custom_call.1} parent=5 // pred_region
        // Predicated region
        $region41: #{tpu_custom_call.1} parent=39 // pred_check
          %p322 = pneg %p45
        $region42: #{tpu_custom_call.1} parent=39 // pred_check_branch
          %324 = sbr.rel (%p322) target = $region44
        $region43: #{tpu_custom_call.1} parent=39 // pred_region
          %s325 = sand.u32 %s35, 1
          %s326 = scalar_lea.sflag [#allocation3], %s325
          %s327 = sand.u32 %s35, 1
          %s328 = smul.addr %s327, 8
          %s329 = scalar_lea.vmem [#allocation2], %s328
          %s331 = ssub.s32 128, 128
          %332 = vsyncadd %s326, %s331
          %s333 = smul.addr %s25, 128
          %s334 = scalar_lea.hbm %s0, %s333
          %s336 = sshll.u32 %s329, 4
          %s337 = int_to_ptr.vmem [resolvable:$true] %s336
          %339 = dma.hbm_to_vmem [thread:$0]  %s334, 128, %s337, %s326
        $region44: #{tpu_custom_call.1} parent=39 // pred_fallthru
          _
        // Predicated region
        $region45: #{tpu_custom_call.1} parent=39 // pred_check
          %p340 = pneg %p71
        $region46: #{tpu_custom_call.1} parent=39 // pred_check_branch
          %342 = sbr.rel (%p340) target = $region48
        $region47: #{tpu_custom_call.1} parent=39 // pred_region
          %s343 = sand.u32 %s25, 1
          %s344 = scalar_lea.sflag [#allocation6], %s343
          %s345 = sand.u32 %s61, 1
          %s346 = smul.addr %s345, 2
          %s347 = scalar_lea.vmem [#allocation5], %s346
          %s349 = ssub.s32 32, 32
          %350 = vsyncadd %s344, %s349
          %s351 = smul.addr %s25, 32
          %s352 = scalar_lea.hbm %s1, %s351
          %s354 = sshll.u32 %s347, 4
          %s355 = int_to_ptr.vmem [resolvable:$true] %s354
          %357 = dma.hbm_to_vmem [thread:$0]  %s352, 32, %s355, %s344
        $region48: #{tpu_custom_call.1} parent=39 // pred_fallthru
          _
        // Predicated region
        $region49: #{tpu_custom_call.1} parent=39 // pred_check
          %p358 = pneg %p97
        $region50: #{tpu_custom_call.1} parent=39 // pred_check_branch
          %360 = sbr.rel (%p358) target = $region52
        $region51: #{tpu_custom_call.1} parent=39 // pred_region
          %p361 = scmp.lt.s32.totalorder %s25, 1
          %s362 = scalar_select %p361, %s25, 1
          %s363 = smul.addr %s362, 8
          %s364 = scalar_lea.vmem %s2, %s363
        $region52: #{tpu_custom_call.1} parent=39 // pred_fallthru
          _
      $region40: #{tpu_custom_call.1} parent=5 // pred_fallthru
        _
      %p365 = scmp.le.s32.totalorder 1, %s25
      %p366 = scmp.lt.s32.totalorder %s25, 3
      %p367 = pnand %p365, %p366
      %p368 = pneg %p367
      // Predicated region
      $region53: #{tpu_custom_call.1} parent=5 // pred_check
        _
      $region54: #{tpu_custom_call.1} parent=5 // pred_check_branch
        %370 = sbr.rel (%p367) target = $region56
      $region55: #{tpu_custom_call.1} parent=5 // pred_region
        %s371 = ssub.s32 %s25, 1
        %s372 = sand.u32 %s38, 1
        %s373 = scalar_lea.sflag [#allocation3], %s372
        %s374 = sand.u32 %s38, 1
        %s375 = smul.addr %s374, 8
        %s376 = scalar_lea.vmem [#allocation2], %s375
        // Predicated region
        $region57: #{tpu_custom_call.1} parent=55 // pred_check
          %p377 = pneg %p51
        $region58: #{tpu_custom_call.1} parent=55 // pred_check_branch
          %379 = sbr.rel (%p377) target = $region60
        $region59: #{tpu_custom_call.1} parent=55 // pred_region
          %380 = dma.done %s373, 128
        $region60: #{tpu_custom_call.1} parent=55 // pred_fallthru
          _
        %s381 = sand.u32 %s30, 1
        %s382 = scalar_lea.sflag [#allocation6], %s381
        %s383 = sand.u32 %s64, 1
        %s384 = smul.addr %s383, 2
        %s385 = scalar_lea.vmem [#allocation5], %s384
        // Predicated region
        $region61: #{tpu_custom_call.1} parent=55 // pred_check
          %p386 = pneg %p77
        $region62: #{tpu_custom_call.1} parent=55 // pred_check_branch
          %388 = sbr.rel (%p386) target = $region64
        $region63: #{tpu_custom_call.1} parent=55 // pred_region
          %389 = dma.done %s382, 32
        $region64: #{tpu_custom_call.1} parent=55 // pred_fallthru
          _
        // Predicated region
        $region65: #{tpu_custom_call.1} parent=55 // pred_check
          %p390 = pneg %p124
        $region66: #{tpu_custom_call.1} parent=55 // pred_check_branch
          %392 = sbr.rel (%p390) target = $region68
        $region67: #{tpu_custom_call.1} parent=55 // pred_region
          %393 = dma.done [#allocation6], 512
        $region68: #{tpu_custom_call.1} parent=55 // pred_fallthru
          _
        // Predicated region
        $region69: #{tpu_custom_call.1} parent=55 // pred_check
          %p394 = pneg %p187
        $region70: #{tpu_custom_call.1} parent=55 // pred_check_branch
          %396 = sbr.rel (%p394) target = $region72
        $region71: #{tpu_custom_call.1} parent=55 // pred_region
          %397 = dma.done [#allocation9], 512
        $region72: #{tpu_custom_call.1} parent=55 // pred_fallthru
          _
        // Predicated region
        $region73: #{tpu_custom_call.1} parent=55 // pred_check
          %p398 = pneg %p208
        $region74: #{tpu_custom_call.1} parent=55 // pred_check_branch
          %400 = sbr.rel (%p398) target = $region76
        $region75: #{tpu_custom_call.1} parent=55 // pred_region
          %401 = dma.done [#allocation9], 512
        $region76: #{tpu_custom_call.1} parent=55 // pred_fallthru
          _
        %s402 = sand.u32 %s38, 1
        %s403 = scalar_lea.sflag [#allocation3], %s402
        %s404 = sand.u32 %s38, 1
        %s405 = smul.addr %s404, 8
        %s406 = scalar_lea.vmem [#allocation2], %s405
        %p407 = pneg %p51
        %p408 = pneg %p48
        %s409 = sand.u32 %s30, 1
        %s410 = scalar_lea.sflag [#allocation6], %s409
        %s411 = sand.u32 %s64, 1
        %s412 = smul.addr %s411, 2
        %s413 = scalar_lea.vmem [#allocation5], %s412
        %p414 = pneg %p77
        %p415 = pneg %p74
        %p416 = scmp.lt.s32.totalorder %s30, 1
        %s417 = scalar_select %p416, %s30, 1
        %s418 = smul.addr %s417, 8
        %s419 = scalar_lea.vmem %s2, %s418
        %p420 = pneg %p103
        %p421 = pneg %p100
        %p422 = pneg %p124
        %p423 = pneg %p121
        %p424 = pneg %p145
        %p425 = pneg %p142
        %p426 = pneg %p166
        %p427 = pneg %p163
        %p428 = pneg %p187
        %p429 = pneg %p184
        %p430 = pneg %p208
        %p431 = pneg %p205
        %p432 = pneg %p229
        %p433 = pneg %p226
        %p434 = pneg %p255
        %p435 = pneg %p252
        %s436 = sand.u32 %s242, 1
        %s437 = scalar_lea.sflag [#allocation4], %s436
        %s438 = sand.u32 %s242, 1
        %s439 = scalar_lea.vmem [#allocation11], %s438
        %p440 = scmp.lt.s32.totalorder %s30, 1
        %s441 = scalar_select %p440, %s30, 1
        %s442 = smul.addr %s441, 8
        %s443 = scalar_lea.vmem %s2, %s442
        %v444 = vld [vmem:[%s376] sm:$0xff]
        %vm445 = vcmask 261120
        %v446 = vsel %vm445, %v444, -inf
        %v447 = vrot.slane %v446, 4
        %v448 = vmax.f32 %v446, %v447
        %v449 = vrot.slane %v448, 2
        %v450 = vmax.f32 %v448, %v449
        %v451 = vrot.slane %v450, 1
        %v452 = vmax.f32 %v450, %v451
        %v453 = vld [vmem:[%s385] sm:$0x3]
        %v455 = vrot.slane %v453, 1
        %v457 = vadd.f32 %v453, %v455
        %v458 = vld [vmem:[#allocation7] sm:$0xff]
        %v459 = vld [vmem:[#allocation7 + $0x8] sm:$0xff]
        %v460 = vld [vmem:[#allocation7 + $0x10] sm:$0xff]
        %v461 = vld [vmem:[#allocation7 + $0x18] sm:$0xff]
        %v462 = vld [vmem:[%s5] sm:$0x1]
        %v464 = vsel %vm445, %v452, 0
        %466 = vmatprep.subr.mxu0 0.0
        %467 = vmatpush1.msra.mxu0 %v458
        %468 = vmatprep.subr.mxu0 0.0
        %469 = vmatpush1.msra.mxu0 %v459
        %470 = vmatprep.subr.mxu0 0.0
        %471 = vmatpush1.msra.mxu0 %v460
        %472 = vmatprep.subr.mxu0 0.0
        %473 = vmatpush1.msra.mxu0 %v461
        %474 = vmatprep.subr.mxu0 0.0
        %475 = vmatpush1.msra.mxu0 0.0
        %476 = vmatprep.subr.mxu0 0.0
        %477 = vmatpush1.msra.mxu0 0.0
        %478 = vmatprep.subr.mxu0 0.0
        %479 = vmatpush1.msra.mxu0 0.0
        %480 = vmatprep.subr.mxu0 0.0
        %481 = vmatpush1.msra.mxu0 0.0
        %482 = vmatprep.subr.mxu0 0.0
        %483 = vmatpush1.msra.mxu0 0.0
        %484 = vmatprep.subr.mxu0 0.0
        %485 = vmatpush1.msra.mxu0 0.0
        %486 = vmatprep.subr.mxu0 0.0
        %487 = vmatpush1.msra.mxu0 0.0
        %488 = vmatprep.subr.mxu0 0.0
        %489 = vmatpush1.msra.mxu0 0.0
        %490 = vmatprep.subr.mxu0 0.0
        %491 = vmatpush1.msra.mxu0 0.0
        %492 = vmatprep.subr.mxu0 0.0
        %493 = vmatpush1.msra.mxu0 0.0
        %494 = vmatprep.subr.mxu0 0.0
        %495 = vmatpush1.msra.mxu0 0.0
        %496 = vmatprep.subr.mxu0 0.0
        %497 = vmatpush1.msra.mxu0 0.0
        %498 = vmatprep.subr.mxu0 0.0
        %499 = vmatpush1.msra.mxu0 0.0
        %500 = vmatprep.subr.mxu0 0.0
        %501 = vmatpush1.msra.mxu0 0.0
        %502 = vmatprep.subr.mxu0 0.0
        %503 = vmatpush1.msra.mxu0 0.0
        %504 = vmatprep.subr.mxu0 0.0
        %505 = vmatpush1.msra.mxu0 0.0
        %506 = vmatprep.subr.mxu0 0.0
        %507 = vmatpush1.msra.mxu0 0.0
        %508 = vmatprep.subr.mxu0 0.0
        %509 = vmatpush1.msra.mxu0 0.0
        %510 = vmatprep.subr.mxu0 0.0
        %511 = vmatpush1.msra.mxu0 0.0
        %512 = vmatprep.subr.mxu0 0.0
        %513 = vmatpush1.msra.mxu0 0.0
        %514 = vmatprep.subr.mxu0 0.0
        %515 = vmatpush1.msra.mxu0 0.0
        %516 = vmatprep.subr.mxu0 0.0
        %517 = vmatpush1.msra.mxu0 0.0
        %518 = vmatprep.subr.mxu0 0.0
        %519 = vmatpush1.msra.mxu0 0.0
        %520 = vmatprep.subr.mxu0 0.0
        %521 = vmatpush1.msra.mxu0 0.0
        %522 = vmatprep.subr.mxu0 0.0
        %523 = vmatpush1.msra.mxu0 0.0
        %524 = vmatprep.subr.mxu0 0.0
        %525 = vmatpush1.msra.mxu0 0.0
        %526 = vmatprep.subr.mxu0 0.0
        %527 = vmatpush1.msra.mxu0 0.0
        %528 = vmatprep.subr.mxu0 0.0
        %529 = vmatpush1.msra.mxu0 0.0
        %530 = vmatprep.mubr.f32.mxu0 0.0
        %531 = vmatmul.mubr.f32.gmra.mrb[0].mxu0 %v464
        %v532 = vpop.f32.mrb[0].mxu0
        %v533 = vadd.f32 %v462, %v532
        %v534 = vpop.f32.mrb[0].mxu0
        %535 = vdwg.mxu0
        %v536 = vld [vmem:[%s4] sm:$0xff]
        %v537 = vld [vmem:[%s4 + $0x8] sm:$0xff]
        %v538 = vld [vmem:[%s4 + $0x10] sm:$0xff]
        %v539 = vld [vmem:[%s4 + $0x18] sm:$0xff]
        %v540 = vld [vmem:[%s5 + $0x1] sm:$0x1]
        %v542 = vsel %vm445, %v457, 0
        %544 = vmatprep.subr.mxu0 0.0
        %545 = vmatpush1.msra.mxu0 %v536
        %546 = vmatprep.subr.mxu0 0.0
        %547 = vmatpush1.msra.mxu0 %v537
        %548 = vmatprep.subr.mxu0 0.0
        %549 = vmatpush1.msra.mxu0 %v538
        %550 = vmatprep.subr.mxu0 0.0
        %551 = vmatpush1.msra.mxu0 %v539
        %552 = vmatprep.subr.mxu0 0.0
        %553 = vmatpush1.msra.mxu0 0.0
        %554 = vmatprep.subr.mxu0 0.0
        %555 = vmatpush1.msra.mxu0 0.0
        %556 = vmatprep.subr.mxu0 0.0
        %557 = vmatpush1.msra.mxu0 0.0
        %558 = vmatprep.subr.mxu0 0.0
        %559 = vmatpush1.msra.mxu0 0.0
        %560 = vmatprep.subr.mxu0 0.0
        %561 = vmatpush1.msra.mxu0 0.0
        %562 = vmatprep.subr.mxu0 0.0
        %563 = vmatpush1.msra.mxu0 0.0
        %564 = vmatprep.subr.mxu0 0.0
        %565 = vmatpush1.msra.mxu0 0.0
        %566 = vmatprep.subr.mxu0 0.0
        %567 = vmatpush1.msra.mxu0 0.0
        %568 = vmatprep.subr.mxu0 0.0
        %569 = vmatpush1.msra.mxu0 0.0
        %570 = vmatprep.subr.mxu0 0.0
        %571 = vmatpush1.msra.mxu0 0.0
        %572 = vmatprep.subr.mxu0 0.0
        %573 = vmatpush1.msra.mxu0 0.0
        %574 = vmatprep.subr.mxu0 0.0
        %575 = vmatpush1.msra.mxu0 0.0
        %576 = vmatprep.subr.mxu0 0.0
        %577 = vmatpush1.msra.mxu0 0.0
        %578 = vmatprep.subr.mxu0 0.0
        %579 = vmatpush1.msra.mxu0 0.0
        %580 = vmatprep.subr.mxu0 0.0
        %581 = vmatpush1.msra.mxu0 0.0
        %582 = vmatprep.subr.mxu0 0.0
        %583 = vmatpush1.msra.mxu0 0.0
        %584 = vmatprep.subr.mxu0 0.0
        %585 = vmatpush1.msra.mxu0 0.0
        %586 = vmatprep.subr.mxu0 0.0
        %587 = vmatpush1.msra.mxu0 0.0
        %588 = vmatprep.subr.mxu0 0.0
        %589 = vmatpush1.msra.mxu0 0.0
        %590 = vmatprep.subr.mxu0 0.0
        %591 = vmatpush1.msra.mxu0 0.0
        %592 = vmatprep.subr.mxu0 0.0
        %593 = vmatpush1.msra.mxu0 0.0
        %594 = vmatprep.subr.mxu0 0.0
        %595 = vmatpush1.msra.mxu0 0.0
        %596 = vmatprep.subr.mxu0 0.0
        %597 = vmatpush1.msra.mxu0 0.0
        %598 = vmatprep.subr.mxu0 0.0
        %599 = vmatpush1.msra.mxu0 0.0
        %600 = vmatprep.subr.mxu0 0.0
        %601 = vmatpush1.msra.mxu0 0.0
        %602 = vmatprep.subr.mxu0 0.0
        %603 = vmatpush1.msra.mxu0 0.0
        %604 = vmatprep.subr.mxu0 0.0
        %605 = vmatpush1.msra.mxu0 0.0
        %606 = vmatprep.subr.mxu0 0.0
        %607 = vmatpush1.msra.mxu0 0.0
        %608 = vmatprep.mubr.f32.mxu0 0.0
        %609 = vmatmul.mubr.f32.gmra.mrb[0].mxu0 %v542
        %v610 = vpop.f32.mrb[0].mxu0
        %v611 = vadd.f32 %v540, %v610
        %v612 = vpop.f32.mrb[0].mxu0
        %613 = vdwg.mxu0
        %v614 = vadd.f32 %v533, %v611
        %v615 = vxor.u32 %v614, 2147483648
        %v616 = vmul.f32 %v615, 1.442695
        %v617 = vpow.pop %v616
        %v618 = vadd.f32 %v617, 1.0
        %v619 = vrcp.pop %v618
        %v620 = vmul.f32 1.0, %v619
        %622 = vrot.lane.b32.xlu0 %v611, 64
        %v623 = vpop.permute.xlu0 %622
        %v625 = vmul.f32 %v620, %v623
        %627 = vrot.lane.b32.xlu0 %v625, 64
        %v628 = vpop.permute.xlu0 %627
        %v630 = vadd.f32 %v533, %v628
        %v631 = vtanh.pop %v630
        %v632 = vsub.f32 1.0, %v620
        %634 = vrot.lane.b32.xlu0 %v631, 96
        %v635 = vpop.permute.xlu0 %634
        %v637 = vmul.f32 %v632, %v635
        %638 = vrot.lane.b32.xlu0 %v457, 32
        %v639 = vpop.permute.xlu0 %638
        %v641 = vmul.f32 %v620, %v639
        %v642 = vadd.f32 %v637, %v641
        %v643 = vlaneseq
        %v644 = vshrl.u32 %v643, 7
        %v645 = vsub.s32 0, %v644
        %v646 = vrot.slane %v642, %v645
        %648 = vrot.lane.b32.xlu0 %v444, 32
        %v649 = vpop.permute.xlu0 %648
        %v651 = vmul.f32 %v646, %v649
        %653 = vrot.lane.b32.xlu0 %v651, 96
        %v654 = vpop.permute.xlu0 %653
        %v656 = vsel %vm445, %v654, 0.0
        %657 = vadd.xlane.f32.xlu0 %v656
        %v658 = vpop.xlane.xlu0 %657
        %v659 = vmul.f32 %v658, 0.17677669
        %v660 = vld [vmem:[%s443] sm:$0xff]
        %v661 = vadd.f32 %v659, %v660
        %vm662 = vcmask 7168
        %v663 = vsel %vm662, %v661, -inf
        %v664 = vrot.slane %v663, 4
        %v665 = vmax.f32 %v663, %v664
        %v666 = vrot.slane %v665, 2
        %v667 = vmax.f32 %v665, %v666
        %v668 = vrot.slane %v667, 1
        %v669 = vmax.f32 %v667, %v668
        %v670 = vsub.f32 %v661, %v669
        %v671 = vmul.f32 %v670, 1.442695
        %v672 = vpow.pop %v671
        %v673 = vsel %vm662, %v672, 0.0
        %v674 = vrot.slane %v673, 4
        %v675 = vadd.f32 %v673, %v674
        %v676 = vrot.slane %v675, 2
        %v677 = vadd.f32 %v675, %v676
        %v678 = vrot.slane %v677, 1
        %v679 = vadd.f32 %v677, %v678
        %v680 = vrcp.pop %v679
        %682 = vset.pattern.permute.xlu0 0
        %683 = vperm.xlu0 %682, %v672
        %v684 = vpop.permute.xlu0 %683
        %v686 = vmul.f32 %v684, %v444
        %v687 = vsel %vm445, %v686, 0.0
        %v688 = vrot.slane %v687, 4
        %v689 = vadd.f32 %v687, %v688
        %v690 = vrot.slane %v689, 2
        %v691 = vadd.f32 %v689, %v690
        %v692 = vrot.slane %v691, 1
        %v693 = vadd.f32 %v691, %v692
        %695 = vset.pattern.permute.xlu0 0
        %696 = vperm.xlu0 %695, %v680
        %v697 = vpop.permute.xlu0 %696
        %v699 = vmul.f32 %v693, %v697
        %v700 = vld [vmem:[#allocation8] sm:$0xff]
        %v701 = vld [vmem:[#allocation8 + $0x8] sm:$0xff]
        %v702 = vld [vmem:[#allocation8 + $0x10] sm:$0xff]
        %v703 = vld [vmem:[#allocation8 + $0x18] sm:$0xff]
        %v704 = vld [vmem:[#allocation10] sm:$0xff]
        %v705 = vld [vmem:[#allocation10 + $0x8] sm:$0xff]
        %v706 = vld [vmem:[#allocation10 + $0x10] sm:$0xff]
        %v707 = vld [vmem:[#allocation10 + $0x18] sm:$0xff]
        %709 = vrot.lane.b32.xlu0 %v642, 96
        %v710 = vpop.permute.xlu0 %709
        %v711 = vsel %vm445, %v710, 0
        %713 = vmatprep.subr.mxu0 0.0
        %714 = vmatpush1.msra.mxu0 %v704
        %715 = vmatprep.subr.mxu0 0.0
        %716 = vmatpush1.msra.mxu0 %v705
        %717 = vmatprep.subr.mxu0 0.0
        %718 = vmatpush1.msra.mxu0 %v706
        %719 = vmatprep.subr.mxu0 0.0
        %720 = vmatpush1.msra.mxu0 %v707
        %721 = vmatprep.subr.mxu0 0.0
        %722 = vmatpush1.msra.mxu0 0.0
        %723 = vmatprep.subr.mxu0 0.0
        %724 = vmatpush1.msra.mxu0 0.0
        %725 = vmatprep.subr.mxu0 0.0
        %726 = vmatpush1.msra.mxu0 0.0
        %727 = vmatprep.subr.mxu0 0.0
        %728 = vmatpush1.msra.mxu0 0.0
        %729 = vmatprep.subr.mxu0 0.0
        %730 = vmatpush1.msra.mxu0 0.0
        %731 = vmatprep.subr.mxu0 0.0
        %732 = vmatpush1.msra.mxu0 0.0
        %733 = vmatprep.subr.mxu0 0.0
        %734 = vmatpush1.msra.mxu0 0.0
        %735 = vmatprep.subr.mxu0 0.0
        %736 = vmatpush1.msra.mxu0 0.0
        %737 = vmatprep.subr.mxu0 0.0
        %738 = vmatpush1.msra.mxu0 0.0
        %739 = vmatprep.subr.mxu0 0.0
        %740 = vmatpush1.msra.mxu0 0.0
        %741 = vmatprep.subr.mxu0 0.0
        %742 = vmatpush1.msra.mxu0 0.0
        %743 = vmatprep.subr.mxu0 0.0
        %744 = vmatpush1.msra.mxu0 0.0
        %745 = vmatprep.subr.mxu0 0.0
        %746 = vmatpush1.msra.mxu0 0.0
        %747 = vmatprep.subr.mxu0 0.0
        %748 = vmatpush1.msra.mxu0 0.0
        %749 = vmatprep.subr.mxu0 0.0
        %750 = vmatpush1.msra.mxu0 0.0
        %751 = vmatprep.subr.mxu0 0.0
        %752 = vmatpush1.msra.mxu0 0.0
        %753 = vmatprep.subr.mxu0 0.0
        %754 = vmatpush1.msra.mxu0 0.0
        %755 = vmatprep.subr.mxu0 0.0
        %756 = vmatpush1.msra.mxu0 0.0
        %757 = vmatprep.subr.mxu0 0.0
        %758 = vmatpush1.msra.mxu0 0.0
        %759 = vmatprep.subr.mxu0 0.0
        %760 = vmatpush1.msra.mxu0 0.0
        %761 = vmatprep.subr.mxu0 0.0
        %762 = vmatpush1.msra.mxu0 0.0
        %763 = vmatprep.subr.mxu0 0.0
        %764 = vmatpush1.msra.mxu0 0.0
        %765 = vmatprep.subr.mxu0 0.0
        %766 = vmatpush1.msra.mxu0 0.0
        %767 = vmatprep.subr.mxu0 0.0
        %768 = vmatpush1.msra.mxu0 0.0
        %769 = vmatprep.subr.mxu0 0.0
        %770 = vmatpush1.msra.mxu0 0.0
        %771 = vmatprep.subr.mxu0 0.0
        %772 = vmatpush1.msra.mxu0 0.0
        %773 = vmatprep.subr.mxu0 0.0
        %774 = vmatpush1.msra.mxu0 0.0
        %775 = vmatprep.subr.mxu0 0.0
        %776 = vmatpush1.msra.mxu0 0.0
        %777 = vmatprep.mubr.f32.mxu0 0.0
        %778 = vmatmul.mubr.f32.gmra.mrb[0].mxu0 %v711
        %v779 = vpop.f32.mrb[0].mxu0
        %v780 = vadd.f32 0.0, %v779
        %v781 = vpop.f32.mrb[0].mxu0
        %782 = vdwg.mxu0
        %v784 = vsel %vm445, %v699, 0
        %786 = vmatprep.subr.mxu0 0.0
        %787 = vmatpush1.msra.mxu0 %v700
        %788 = vmatprep.subr.mxu0 0.0
        %789 = vmatpush1.msra.mxu0 %v701
        %790 = vmatprep.subr.mxu0 0.0
        %791 = vmatpush1.msra.mxu0 %v702
        %792 = vmatprep.subr.mxu0 0.0
        %793 = vmatpush1.msra.mxu0 %v703
        %794 = vmatprep.subr.mxu0 0.0
        %795 = vmatpush1.msra.mxu0 0.0
        %796 = vmatprep.subr.mxu0 0.0
        %797 = vmatpush1.msra.mxu0 0.0
        %798 = vmatprep.subr.mxu0 0.0
        %799 = vmatpush1.msra.mxu0 0.0
        %800 = vmatprep.subr.mxu0 0.0
        %801 = vmatpush1.msra.mxu0 0.0
        %802 = vmatprep.subr.mxu0 0.0
        %803 = vmatpush1.msra.mxu0 0.0
        %804 = vmatprep.subr.mxu0 0.0
        %805 = vmatpush1.msra.mxu0 0.0
        %806 = vmatprep.subr.mxu0 0.0
        %807 = vmatpush1.msra.mxu0 0.0
        %808 = vmatprep.subr.mxu0 0.0
        %809 = vmatpush1.msra.mxu0 0.0
        %810 = vmatprep.subr.mxu0 0.0
        %811 = vmatpush1.msra.mxu0 0.0
        %812 = vmatprep.subr.mxu0 0.0
        %813 = vmatpush1.msra.mxu0 0.0
        %814 = vmatprep.subr.mxu0 0.0
        %815 = vmatpush1.msra.mxu0 0.0
        %816 = vmatprep.subr.mxu0 0.0
        %817 = vmatpush1.msra.mxu0 0.0
        %818 = vmatprep.subr.mxu0 0.0
        %819 = vmatpush1.msra.mxu0 0.0
        %820 = vmatprep.subr.mxu0 0.0
        %821 = vmatpush1.msra.mxu0 0.0
        %822 = vmatprep.subr.mxu0 0.0
        %823 = vmatpush1.msra.mxu0 0.0
        %824 = vmatprep.subr.mxu0 0.0
        %825 = vmatpush1.msra.mxu0 0.0
        %826 = vmatprep.subr.mxu0 0.0
        %827 = vmatpush1.msra.mxu0 0.0
        %828 = vmatprep.subr.mxu0 0.0
        %829 = vmatpush1.msra.mxu0 0.0
        %830 = vmatprep.subr.mxu0 0.0
        %831 = vmatpush1.msra.mxu0 0.0
        %832 = vmatprep.subr.mxu0 0.0
        %833 = vmatpush1.msra.mxu0 0.0
        %834 = vmatprep.subr.mxu0 0.0
        %835 = vmatpush1.msra.mxu0 0.0
        %836 = vmatprep.subr.mxu0 0.0
        %837 = vmatpush1.msra.mxu0 0.0
        %838 = vmatprep.subr.mxu0 0.0
        %839 = vmatpush1.msra.mxu0 0.0
        %840 = vmatprep.subr.mxu0 0.0
        %841 = vmatpush1.msra.mxu0 0.0
        %842 = vmatprep.subr.mxu0 0.0
        %843 = vmatpush1.msra.mxu0 0.0
        %844 = vmatprep.subr.mxu0 0.0
        %845 = vmatpush1.msra.mxu0 0.0
        %846 = vmatprep.subr.mxu0 0.0
        %847 = vmatpush1.msra.mxu0 0.0
        %848 = vmatprep.subr.mxu0 0.0
        %849 = vmatpush1.msra.mxu0 0.0
        %850 = vmatprep.mubr.f32.mxu0 0.0
        %851 = vmatmul.mubr.f32.gmra.mrb[0].mxu0 %v784
        %v852 = vpop.f32.mrb[0].mxu0
        %v853 = vadd.f32 %v780, %v852
        %v854 = vpop.f32.mrb[0].mxu0
        %855 = vdwg.mxu0
        %v856 = vld [vmem:[%s8] sm:$0x1]
        %v857 = vadd.f32 %v853, %v856
        %858 = vst [vmem:[%s439] sm:$0x1] %v857
        %s859 = sand.u32 %s242, 1
        %s860 = scalar_lea.sflag [#allocation4], %s859
        %s861 = sand.u32 %s242, 1
        %s862 = scalar_lea.vmem [#allocation11], %s861
        // Predicated region
        $region77: #{tpu_custom_call.1} parent=55 // pred_check
          %p863 = pneg %p252
        $region78: #{tpu_custom_call.1} parent=55 // pred_check_branch
          %865 = sbr.rel (%p863) target = $region80
        $region79: #{tpu_custom_call.1} parent=55 // pred_region
          %s867 = ssub.s32 16, 16
          %868 = vsyncadd %s860, %s867
          %s869 = smul.addr %s30, 16
          %s870 = scalar_lea.hbm %s9, %s869
          %s872 = sshll.u32 %s862, 4
          %s873 = int_to_ptr.vmem [resolvable:$true] %s872
          %875 = dma.vmem_to_hbm [thread:$0]  %s873, 16, %s870, %s860
        $region80: #{tpu_custom_call.1} parent=55 // pred_fallthru
          _
      $region56: #{tpu_custom_call.1} parent=5 // pred_fallthru
        _
      %p876 = scmp.le.s32.totalorder 2, %s25
      // Predicated region
      $region81: #{tpu_custom_call.1} parent=5 // pred_check
        %p877 = pneg %p876
      $region82: #{tpu_custom_call.1} parent=5 // pred_check_branch
        %879 = sbr.rel (%p877) target = $region84
      $region83: #{tpu_custom_call.1} parent=5 // pred_region
        %s880 = ssub.s32 %s25, 2
        // Predicated region
        $region85: #{tpu_custom_call.1} parent=83 // pred_check
          %p881 = pneg %p258
        $region86: #{tpu_custom_call.1} parent=83 // pred_check_branch
          %883 = sbr.rel (%p881) target = $region88
        $region87: #{tpu_custom_call.1} parent=83 // pred_region
          %s884 = sand.u32 %s243, 1
          %s885 = scalar_lea.sflag [#allocation4], %s884
          %s886 = sand.u32 %s243, 1
          %s887 = scalar_lea.vmem [#allocation11], %s886
          %888 = dma.done %s885, 16
        $region88: #{tpu_custom_call.1} parent=83 // pred_fallthru
          _
      $region84: #{tpu_custom_call.1} parent=5 // pred_fallthru
        _
    $region6: #{tpu_custom_call.1} parent=1 // loop_footer
      %s29 = sadd.s32 1, %s25
    $region7: #{tpu_custom_call.1} parent=1 // loop_footer_branch
      %24 = sbr.rel target = $region3
    $region8: #{tpu_custom_call.1} parent=1 // loop_exit
      _
    %889 = vsyncpa [#allocation3], 1
    %s890 = scalar_lea.sflag [#allocation3], 1
    %891 = vsyncpa %s890, 1
    %892 = vsyncpa [#allocation6], 1
    %s893 = scalar_lea.sflag [#allocation6], 1
    %894 = vsyncpa %s893, 1
    %895 = vsyncpa [#allocation9], 1
    %896 = vsyncpa [#allocation4], 1
    %s897 = scalar_lea.sflag [#allocation4], 1
    %898 = vsyncpa %s897, 1

</llo_original>
